<compile_context>
chip_gen: v6e
topology: v6e:2x2x1
jax: 0.10.0
libtpu: 0.0.40
codegen_flags: <defaults>
</compile_context>

<pallas_src>
import functools

import jax
import jax.numpy as jnp
from jax.experimental import pallas as pl
from jax.experimental.pallas import tpu as pltpu


def _round_up(n, m):
    return ((n + m - 1) // m) * m


def _scale_rotate_kernel(x_ref, o_ref):
    # x_ref: (2, TILE_ROWS, 128) in VMEM, o_ref: (6, TILE_ROWS, 128) in VMEM.
    # Compute sin/cos in f32 (v5e EUP has no bf16 path; also fixes accuracy),
    # cast back to the output dtype only on store.
    ang = x_ref[0].astype(jnp.float32)        # (TILE_ROWS, 128) dense slab
    sc = x_ref[1].astype(jnp.float32)         # (TILE_ROWS, 128)

    c_f = jnp.cos(ang) * sc                   # full-vreg EUP + VPU work
    s_f = jnp.sin(ang) * sc

    c = c_f.astype(o_ref.dtype)
    s = s_f.astype(o_ref.dtype)
    ns = (-s_f).astype(o_ref.dtype)
    z = jnp.zeros_like(c)

    # Full (TILE_ROWS, 128) unmasked stores. Row-major flatten of (3, 2):
    # [m00, m01, m10, m11, m20, m21].
    o_ref[0] = c
    o_ref[1] = s
    o_ref[2] = ns
    o_ref[3] = c
    o_ref[4] = z
    o_ref[5] = z


@functools.partial(jax.jit, static_argnames=("tile_rows", "lane_major"))
def scale_rotate_matrix(x, *, tile_rows=1024, lane_major=False):
    """x: (B, P) with P >= 2.

    Returns (B, 3, 2) matching the PyTorch module, or the transpose-free
    lane-major (3, 2, B) layout if lane_major=True (for consumers that can
    take it -- skips one full HBM round trip of the output).
    """
    B = x.shape[0]
    dtype = x.dtype

    # Flip layout: batch on the lane axis -> (2, B). Only first two params used.
    # TODO(synk): keep the native (B, 2) layout and fuse this relayout into the
    # pallas_call input pipeline (allow_input_fusion) to shave the remaining
    # ~15-20% of HBM traffic spent on the standalone input transpose.
    xt = x[:, :2].T                                       # (2, B)

    # Fold B into dense (rows, 128) slabs; rows padded to a sublane multiple.
    rows = _round_up(B, 128) // 128
    rows8 = _round_up(rows, 8)
    tr = min(tile_rows, rows8)
    if rows8 >= 16:
        # v7x megacore: keep >= 2 grid steps so ("parallel",) shards over 2 TCs.
        tr = min(tr, _round_up(pl.cdiv(rows8, 2), 8))
    rows_p = _round_up(rows8, tr)
    Bp = rows_p * 128

    if Bp != B:
        xt = jnp.pad(xt, ((0, 0), (0, Bp - B)))           # cos(0)*0 = 0 in pad
    x3 = xt.reshape(2, rows_p, 128)                       # free contiguous reshape

    grid = (rows_p // tr,)
    itemsize = jnp.dtype(dtype).itemsize

    flat = pl.pallas_call(
        _scale_rotate_kernel,
        out_shape=jax.ShapeDtypeStruct((6, rows_p, 128), dtype),
        grid=grid,
        in_specs=[pl.BlockSpec((2, tr, 128), lambda i: (0, i, 0))],
        out_specs=pl.BlockSpec((6, tr, 128), lambda i: (0, i, 0)),
        compiler_params=pltpu.CompilerParams(
            dimension_semantics=("parallel",),            # shards over 2 TCs on v7x
        ),
        cost_estimate=pl.CostEstimate(
            flops=3 * Bp,                                 # 2 muls + 1 neg per elem
            transcendentals=2 * Bp,                       # sin + cos per elem
            bytes_accessed=(2 + 6) * itemsize * Bp,       # dtype/padding aware
        ),
    )(x3)

    flat2 = flat.reshape(6, Bp)[:, :B]                    # (6, B), free reshape + slice

    if lane_major:
        # Transpose-free layout: (3, 2, B). out[:, r, c] == lane_major[r, c, :].
        return flat2.reshape(3, 2, B)

    # PyTorch-facing (B, 3, 2) layout.
    # TODO(synk): if the consumer accepts the lane-major (3, 2, B) layout, call
    # with lane_major=True to skip this transpose (~half the end-to-end HBM
    # traffic of this op is the XLA relayout below).
    return flat2.T.reshape(B, 3, 2)


def _reference(x):
    angles = x[:, 0].astype(jnp.float32)
    scaler = x[:, 1].astype(jnp.float32)
    c = jnp.cos(angles) * scaler
    s = jnp.sin(angles) * scaler
    z = jnp.zeros_like(c)
    out = jnp.stack(
        [jnp.stack([c, s], axis=-1),
         jnp.stack([-s, c], axis=-1),
         jnp.stack([z, z], axis=-1)],
        axis=1,
    )
    return out.astype(x.dtype)


if __name__ == "__main__":
    key = jax.random.PRNGKey(0)
    keys = jax.random.split(key, 4)

    # Small deterministic test: (B, 2) = [angle, scale] per batch element.
    B = 8
    x = jax.random.normal(keys[0], (B, 2), dtype=jnp.float32)
    out = jax.block_until_ready(scale_rotate_matrix(x))
    ref = _reference(x)
    assert out.shape == (B, 3, 2), out.shape
    assert jnp.allclose(out, ref, atol=1e-6, rtol=1e-6)

    # Padding / multi-column robustness (B not a multiple of 128, P > 2).
    B2 = 300
    x2 = jax.random.normal(keys[1], (B2, 5), dtype=jnp.float32)
    out2 = jax.block_until_ready(scale_rotate_matrix(x2))
    ref2 = _reference(x2)
    assert out2.shape == (B2, 3, 2), out2.shape
    assert jnp.allclose(out2, ref2, atol=1e-6, rtol=1e-6)

    # Multi-step grid + v7x 2-step cap path.
    B3 = 5000
    x3 = jax.random.normal(keys[2], (B3, 2), dtype=jnp.float32)
    out3 = jax.block_until_ready(scale_rotate_matrix(x3))
    ref3 = _reference(x3)
    assert out3.shape == (B3, 3, 2), out3.shape
    assert jnp.allclose(out3, ref3, atol=1e-6, rtol=1e-6)

    # Lane-major (transpose-free) output path.
    out3_lm = jax.block_until_ready(scale_rotate_matrix(x3, lane_major=True))
    assert out3_lm.shape == (3, 2, B3), out3_lm.shape
    assert jnp.allclose(jnp.transpose(out3_lm, (2, 0, 1)), ref3, atol=1e-6, rtol=1e-6)

    # bf16 dtype handling (f32 internal math, bf16 store).
    B4 = 257
    x4 = jax.random.normal(keys[3], (B4, 2), dtype=jnp.bfloat16)
    out4 = jax.block_until_ready(scale_rotate_matrix(x4))
    ref4 = _reference(x4)
    assert out4.shape == (B4, 3, 2), out4.shape
    assert out4.dtype == jnp.bfloat16
    assert jnp.allclose(out4.astype(jnp.float32), ref4.astype(jnp.float32),
                        atol=1e-2, rtol=2e-2)

    print("KERNEL_OK")
</pallas_src>

<mosaic_0001>
module attributes {stable_mosaic.version = 11 : i64} {
  func.func @_scale_rotate_kernel(%arg0: i32, %arg1: memref<2x8x128xf32, #tpu.memory_space<vmem>>, %arg2: memref<6x8x128xf32, #tpu.memory_space<vmem>>) attributes {dimension_semantics = [#tpu.dimension_semantics<parallel>], iteration_bounds = array<i64: 1>, scalar_prefetch = 0 : i64, scratch_operands = 0 : i64, tpu.core_type = #tpu.core_type<tc>, window_params = [{transform_indices = @transform_0, window_bounds = array<i64: 2, 8, 128>}, {transform_indices = @transform_1, window_bounds = array<i64: 6, 8, 128>}]} {
    %c0 = arith.constant 0 : index
    %c0_0 = arith.constant 0 : index
    %c0_1 = arith.constant 0 : index
    %0 = vector.load %arg1[%c0, %c0_0, %c0_1] : memref<2x8x128xf32, #tpu.memory_space<vmem>>, vector<1x8x128xf32>
    %1 = vector.shape_cast %0 : vector<1x8x128xf32> to vector<8x128xf32>
    %c1 = arith.constant 1 : index
    %c0_2 = arith.constant 0 : index
    %c0_3 = arith.constant 0 : index
    %2 = vector.load %arg1[%c1, %c0_2, %c0_3] : memref<2x8x128xf32, #tpu.memory_space<vmem>>, vector<1x8x128xf32>
    %3 = vector.shape_cast %2 : vector<1x8x128xf32> to vector<8x128xf32>
    %4 = math.cos %1 : vector<8x128xf32>
    %5 = arith.mulf %4, %3 : vector<8x128xf32>
    %6 = math.sin %1 : vector<8x128xf32>
    %7 = arith.mulf %6, %3 : vector<8x128xf32>
    %cst = arith.constant 0.000000e+00 : f32
    %8 = vector.broadcast %cst : f32 to vector<8x128xf32>
    %9 = arith.subf %8, %7 : vector<8x128xf32>
    %cst_4 = arith.constant 0.000000e+00 : f32
    %10 = vector.broadcast %cst_4 : f32 to vector<8x128xf32>
    %c0_5 = arith.constant 0 : index
    %c0_6 = arith.constant 0 : index
    %c0_7 = arith.constant 0 : index
    %11 = vector.load %arg2[%c0_5, %c0_6, %c0_7] : memref<6x8x128xf32, #tpu.memory_space<vmem>>, vector<1x8x128xf32>
    %12 = vector.shape_cast %11 : vector<1x8x128xf32> to vector<8x128xf32>
    %13 = vector.shape_cast %5 : vector<8x128xf32> to vector<1x8x128xf32>
    tpu.vector_store %arg2[%c0_5, %c0_6, %c0_7], %13 {strides = array<i32>} : memref<6x8x128xf32, #tpu.memory_space<vmem>>, vector<1x8x128xf32>,
    %c1_8 = arith.constant 1 : index
    %c0_9 = arith.constant 0 : index
    %c0_10 = arith.constant 0 : index
    %14 = vector.load %arg2[%c1_8, %c0_9, %c0_10] : memref<6x8x128xf32, #tpu.memory_space<vmem>>, vector<1x8x128xf32>
    %15 = vector.shape_cast %14 : vector<1x8x128xf32> to vector<8x128xf32>
    %16 = vector.shape_cast %7 : vector<8x128xf32> to vector<1x8x128xf32>
    tpu.vector_store %arg2[%c1_8, %c0_9, %c0_10], %16 {strides = array<i32>} : memref<6x8x128xf32, #tpu.memory_space<vmem>>, vector<1x8x128xf32>,
    %c2 = arith.constant 2 : index
    %c0_11 = arith.constant 0 : index
    %c0_12 = arith.constant 0 : index
    %17 = vector.load %arg2[%c2, %c0_11, %c0_12] : memref<6x8x128xf32, #tpu.memory_space<vmem>>, vector<1x8x128xf32>
    %18 = vector.shape_cast %17 : vector<1x8x128xf32> to vector<8x128xf32>
    %19 = vector.shape_cast %9 : vector<8x128xf32> to vector<1x8x128xf32>
    tpu.vector_store %arg2[%c2, %c0_11, %c0_12], %19 {strides = array<i32>} : memref<6x8x128xf32, #tpu.memory_space<vmem>>, vector<1x8x128xf32>,
    %c3 = arith.constant 3 : index
    %c0_13 = arith.constant 0 : index
    %c0_14 = arith.constant 0 : index
    %20 = vector.load %arg2[%c3, %c0_13, %c0_14] : memref<6x8x128xf32, #tpu.memory_space<vmem>>, vector<1x8x128xf32>
    %21 = vector.shape_cast %20 : vector<1x8x128xf32> to vector<8x128xf32>
    %22 = vector.shape_cast %5 : vector<8x128xf32> to vector<1x8x128xf32>
    tpu.vector_store %arg2[%c3, %c0_13, %c0_14], %22 {strides = array<i32>} : memref<6x8x128xf32, #tpu.memory_space<vmem>>, vector<1x8x128xf32>,
    %c4 = arith.constant 4 : index
    %c0_15 = arith.constant 0 : index
    %c0_16 = arith.constant 0 : index
    %23 = vector.load %arg2[%c4, %c0_15, %c0_16] : memref<6x8x128xf32, #tpu.memory_space<vmem>>, vector<1x8x128xf32>
    %24 = vector.shape_cast %23 : vector<1x8x128xf32> to vector<8x128xf32>
    %25 = vector.shape_cast %10 : vector<8x128xf32> to vector<1x8x128xf32>
    tpu.vector_store %arg2[%c4, %c0_15, %c0_16], %25 {strides = array<i32>} : memref<6x8x128xf32, #tpu.memory_space<vmem>>, vector<1x8x128xf32>,
    %c5 = arith.constant 5 : index
    %c0_17 = arith.constant 0 : index
    %c0_18 = arith.constant 0 : index
    %26 = vector.load %arg2[%c5, %c0_17, %c0_18] : memref<6x8x128xf32, #tpu.memory_space<vmem>>, vector<1x8x128xf32>
    %27 = vector.shape_cast %26 : vector<1x8x128xf32> to vector<8x128xf32>
    %28 = vector.shape_cast %10 : vector<8x128xf32> to vector<1x8x128xf32>
    tpu.vector_store %arg2[%c5, %c0_17, %c0_18], %28 {strides = array<i32>} : memref<6x8x128xf32, #tpu.memory_space<vmem>>, vector<1x8x128xf32>,
    return
  }
  func.func @transform_0(%arg0: i32) -> (i32, i32, i32) {
    %c0_i32 = arith.constant 0 : i32
    %c0_i32_0 = arith.constant 0 : i32
    %c0_i32_1 = arith.constant 0 : i32
    return %c0_i32, %arg0, %c0_i32_0 : i32, i32, i32
  }
  func.func @transform_1(%arg0: i32) -> (i32, i32, i32) {
    %c0_i32 = arith.constant 0 : i32
    %c0_i32_0 = arith.constant 0 : i32
    %c0_i32_1 = arith.constant 0 : i32
    return %c0_i32, %arg0, %c0_i32_0 : i32, i32, i32
  }
}

</mosaic_0001>

<llo_original>
// kernel: scale_rotate_matrix.1
$region0: #{scale_rotate_matrix.1}
  #allocation0 [shape = 'u32[]', space=smem, size = 0x4, offset = 0x4, fixed_abs, tag = 'smem constant byte address 0x4 - core index']
  #allocation1 [shape = 'u32[144,128]{1,0:T(1,128)}', space=vmem, size = 0x12000, scoped, tag = 'internal scratch']
  %s0 = inlined_call_operand.vmem [shape: f32[2,8,128], index: 0, kind: input, shape index: {}]
  %s1 = inlined_call_operand.vmem [shape: f32[6,8,128], index: 1, kind: output, shape index: {}]
  %s2 = sld [smem:[#allocation0]]
  $region14: #{scale_rotate_matrix.1} parent=0
    _
  %s4 = ssub.s32 1, %s2
  %s5 = scalar_select 0, %s4, %s2
  // Predicated region
  $region2: #{scale_rotate_matrix.1} parent=0 // pred_check
    _
  $region3: #{scale_rotate_matrix.1} parent=0 // pred_check_branch
    %7 = sbr.rel (0) target = $region5
  $region4: #{scale_rotate_matrix.1} parent=0 // pred_region
    _
  $region5: #{scale_rotate_matrix.1} parent=0 // pred_fallthru
    _
  %v8 = vld [vmem:[%s0] sm:$0xff]
  %s9 = scalar_lea.vmem %s0, 8
  %v10 = vld [vmem:[%s9] sm:$0xff]
  %v11 = vand.u32 2147483647, %v8
  %vm12 = vcmp.le.f32.partialorder %v11, 0.7853982
  %vm13 = vcmp.lt.s32.totalorder %v8, 0
  %v14 = vand.u32 %v8, 2139095040
  %v15 = vshrl.u32 %v14, 23
  %v16 = vsub.s32 %v15, 127
  %v17 = vand.u32 2147483647, %v8
  %v18 = vand.u32 %v17, 8388607
  %v19 = vor.u32 %v18, 8388608
  %v20 = vsub.s32 0, %v19
  %v21 = vadd.s32 %v16, 1
  %vm22 = vcmp.gt.s32.totalorder %v21, 0
  %v23 = vsel %vm22, %v21, 0
  %v24 = vshrl.u32 %v23, 5
  %v25 = vand.u32 %v23, 31
  %v26 = vsub.s32 32, %v25
  %v27 = vshrl.u32 683565275, %v26
  %v28 = vshll.u32 683565275, %v25
  %v29 = vshrl.u32 2475754826, %v26
  %v30 = vor.u32 %v28, %v29
  %v31 = vshll.u32 2475754826, %v25
  %v32 = vshrl.u32 2131351028, %v26
  %v33 = vor.u32 %v31, %v32
  %v34 = vshll.u32 2131351028, %v25
  %v35 = vshrl.u32 2102212464, %v26
  %v36 = vor.u32 %v34, %v35
  %v37 = vshll.u32 2102212464, %v25
  %v38 = vshrl.u32 920167782, %v26
  %v39 = vor.u32 %v37, %v38
  %v40 = vshll.u32 920167782, %v25
  %v41 = vshrl.u32 1326507024, %v26
  %v42 = vor.u32 %v40, %v41
  %vm43 = vcmp.lt.s32.totalorder %v24, 1
  %vm44 = vcmp.lt.s32.totalorder %v24, 2
  %vm45 = vcmp.lt.s32.totalorder %v24, 3
  %vm46 = vcmp.lt.s32.totalorder %v24, 4
  %v47 = vsel %vm43, %v27, %v30
  %v48 = vsel %vm46, %v36, 2102212464
  %v49 = vsel %vm45, %v33, %v48
  %v50 = vsel %vm44, %v47, %v49
  %v51 = vsel %vm43, %v30, %v33
  %v52 = vsel %vm46, %v39, 920167782
  %v53 = vsel %vm45, %v36, %v52
  %v54 = vsel %vm44, %v51, %v53
  %v55 = vsel %vm43, %v33, %v36
  %v56 = vsel %vm46, %v42, 1326507024
  %v57 = vsel %vm45, %v39, %v56
  %v58 = vsel %vm44, %v55, %v57
  %v59 = vshll.u32 %v19, 8
  %v60 = vmul.u32.u64.compose %v59, %v58
  %v61 = vextract.low.u32 %v60
  %v62 = vextract.high.u32 %v60
  %v63 = vmul.u32.u64.compose %v59, %v54
  %v64 = vextract.low.u32 %v63
  %v65 = vextract.high.u32 %v63
  %v66 = vmul.u32 %v59, %v50
  %v67 = vadd.s32 %v62, %v64
  %vm68 = vc.u32 %v62, %v64
  %v69 = vadd.s32 %v65, 1
  %v70 = vsel %vm68, %v69, %v65
  %v71 = vadd.s32 %v66, %v70
  %v72 = vadd.s32 %v71, 536870912
  %v73 = vshrl.u32 %v72, 30
  %v74 = vshll.u32 %v73, 30
  %v75 = vsub.s32 %v71, %v74
  %vm76 = vcmp.lt.s32.totalorder %v75, 0
  %v77 = vsub.s32 0, %v75
  %v78 = vsel %vm76, %v77, %v75
  %v79 = vclz %v78
  %v80 = vsub.s32 %v79, 2
  %vm81 = vcmp.gt.s32.totalorder 0, %v80
  %v82 = vsel %vm81, 0, %v80
  %v83 = vsub.s32 32, %v82
  %v84 = vshll.u32 %v75, %v82
  %v85 = vshrl.u32 %v67, %v83
  %v86 = vor.u32 %v84, %v85
  %v87 = vsub.s32 4294967266, %v82
  %v88 = vadd.s32 %v87, 127
  %v89 = vshll.u32 %v88, 23
  %v90 = vor.u32 4788187, %v89
  %v91 = vand.u32 2147483647, %v90
  %v93 = vcvt.s32.f32 %v86
  %v94 = vmul.f32 %v93, %v91
  %v95 = vxor.u32 %v94, 2147483648
  %v96 = vsel %vm13, %v95, %v94
  %v97 = vsub.s32 4, %v73
  %v98 = vsel %vm13, %v97, %v73
  %v99 = vsel %vm12, %v8, %v96
  %v100 = vsel %vm12, 0, %v98
  %v101 = vcosq.f32.pop %v99
  %v102 = vsinq.f32.pop %v99
  %vm103 = vweird.f32 %v8
  %v104 = vand.u32 %v100, 3
  %vm105 = vcmp.lt.s32.totalorder %v104, 2
  %vm106 = vcmp.eq.s32.totalorder %v104, 0
  %v107 = vxor.u32 %v102, 2147483648
  %v108 = vsel %vm106, %v101, %v107
  %vm109 = vcmp.eq.s32.totalorder %v104, 2
  %v110 = vxor.u32 %v101, 2147483648
  %v111 = vsel %vm109, %v110, %v102
  %v112 = vsel %vm105, %v108, %v111
  %v113 = vsel %vm103, nan, %v112
  %v114 = vmul.f32 %v113, %v10
  %v115 = vand.u32 2147483647, %v8
  %vm116 = vcmp.le.f32.partialorder %v115, 0.7853982
  %vm117 = vcmp.lt.s32.totalorder %v8, 0
  %v118 = vand.u32 %v8, 2139095040
  %v119 = vshrl.u32 %v118, 23
  %v120 = vsub.s32 %v119, 127
  %v121 = vand.u32 2147483647, %v8
  %v122 = vand.u32 %v121, 8388607
  %v123 = vor.u32 %v122, 8388608
  %v124 = vsub.s32 0, %v123
  %v125 = vadd.s32 %v120, 1
  %vm126 = vcmp.gt.s32.totalorder %v125, 0
  %v127 = vsel %vm126, %v125, 0
  %v128 = vshrl.u32 %v127, 5
  %v129 = vand.u32 %v127, 31
  %v130 = vsub.s32 32, %v129
  %v131 = vshrl.u32 683565275, %v130
  %v132 = vshll.u32 683565275, %v129
  %v133 = vshrl.u32 2475754826, %v130
  %v134 = vor.u32 %v132, %v133
  %v135 = vshll.u32 2475754826, %v129
  %v136 = vshrl.u32 2131351028, %v130
  %v137 = vor.u32 %v135, %v136
  %v138 = vshll.u32 2131351028, %v129
  %v139 = vshrl.u32 2102212464, %v130
  %v140 = vor.u32 %v138, %v139
  %v141 = vshll.u32 2102212464, %v129
  %v142 = vshrl.u32 920167782, %v130
  %v143 = vor.u32 %v141, %v142
  %v144 = vshll.u32 920167782, %v129
  %v145 = vshrl.u32 1326507024, %v130
  %v146 = vor.u32 %v144, %v145
  %vm147 = vcmp.lt.s32.totalorder %v128, 1
  %vm148 = vcmp.lt.s32.totalorder %v128, 2
  %vm149 = vcmp.lt.s32.totalorder %v128, 3
  %vm150 = vcmp.lt.s32.totalorder %v128, 4
  %v151 = vsel %vm147, %v131, %v134
  %v152 = vsel %vm150, %v140, 2102212464
  %v153 = vsel %vm149, %v137, %v152
  %v154 = vsel %vm148, %v151, %v153
  %v155 = vsel %vm147, %v134, %v137
  %v156 = vsel %vm150, %v143, 920167782
  %v157 = vsel %vm149, %v140, %v156
  %v158 = vsel %vm148, %v155, %v157
  %v159 = vsel %vm147, %v137, %v140
  %v160 = vsel %vm150, %v146, 1326507024
  %v161 = vsel %vm149, %v143, %v160
  %v162 = vsel %vm148, %v159, %v161
  %v163 = vshll.u32 %v123, 8
  %v164 = vmul.u32.u64.compose %v163, %v162
  %v165 = vextract.low.u32 %v164
  %v166 = vextract.high.u32 %v164
  %v167 = vmul.u32.u64.compose %v163, %v158
  %v168 = vextract.low.u32 %v167
  %v169 = vextract.high.u32 %v167
  %v170 = vmul.u32 %v163, %v154
  %v171 = vadd.s32 %v166, %v168
  %vm172 = vc.u32 %v166, %v168
  %v173 = vadd.s32 %v169, 1
  %v174 = vsel %vm172, %v173, %v169
  %v175 = vadd.s32 %v170, %v174
  %v176 = vadd.s32 %v175, 536870912
  %v177 = vshrl.u32 %v176, 30
  %v178 = vshll.u32 %v177, 30
  %v179 = vsub.s32 %v175, %v178
  %vm180 = vcmp.lt.s32.totalorder %v179, 0
  %v181 = vsub.s32 0, %v179
  %v182 = vsel %vm180, %v181, %v179
  %v183 = vclz %v182
  %v184 = vsub.s32 %v183, 2
  %vm185 = vcmp.gt.s32.totalorder 0, %v184
  %v186 = vsel %vm185, 0, %v184
  %v187 = vsub.s32 32, %v186
  %v188 = vshll.u32 %v179, %v186
  %v189 = vshrl.u32 %v171, %v187
  %v190 = vor.u32 %v188, %v189
  %v191 = vsub.s32 4294967266, %v186
  %v192 = vadd.s32 %v191, 127
  %v193 = vshll.u32 %v192, 23
  %v194 = vor.u32 4788187, %v193
  %v195 = vand.u32 2147483647, %v194
  %v197 = vcvt.s32.f32 %v190
  %v198 = vmul.f32 %v197, %v195
  %v199 = vxor.u32 %v198, 2147483648
  %v200 = vsel %vm117, %v199, %v198
  %v201 = vsub.s32 4, %v177
  %v202 = vsel %vm117, %v201, %v177
  %v203 = vsel %vm116, %v8, %v200
  %v204 = vsel %vm116, 0, %v202
  %v205 = vcosq.f32.pop %v203
  %v206 = vsinq.f32.pop %v203
  %vm207 = vweird.f32 %v8
  %v208 = vadd.s32 %v204, 3
  %v209 = vand.u32 %v208, 3
  %vm210 = vcmp.lt.s32.totalorder %v209, 2
  %vm211 = vcmp.eq.s32.totalorder %v209, 0
  %v212 = vxor.u32 %v206, 2147483648
  %v213 = vsel %vm211, %v205, %v212
  %vm214 = vcmp.eq.s32.totalorder %v209, 2
  %v215 = vxor.u32 %v205, 2147483648
  %v216 = vsel %vm214, %v215, %v206
  %v217 = vsel %vm210, %v213, %v216
  %v218 = vsel %vm207, nan, %v217
  %v219 = vmul.f32 %v218, %v10
  %v220 = vsub.f32 0.0, %v219
  %221 = vst [vmem:[%s1] sm:$0xff] %v114
  %s222 = scalar_lea.vmem %s1, 8
  %223 = vst [vmem:[%s222] sm:$0xff] %v219
  %s224 = scalar_lea.vmem %s1, 16
  %225 = vst [vmem:[%s224] sm:$0xff] %v220
  %s226 = scalar_lea.vmem %s1, 24
  %227 = vst [vmem:[%s226] sm:$0xff] %v114
  %s228 = scalar_lea.vmem %s1, 32
  %229 = vst [vmem:[%s228] sm:$0xff] 0.0
  %s230 = scalar_lea.vmem %s1, 40
  %231 = vst [vmem:[%s230] sm:$0xff] 0.0
  // Predicated region
  $region6: #{scale_rotate_matrix.1} parent=0 // pred_check
    _
  $region7: #{scale_rotate_matrix.1} parent=0 // pred_check_branch
    %233 = sbr.rel (0) target = $region9
  $region8: #{scale_rotate_matrix.1} parent=0 // pred_region
    _
  $region9: #{scale_rotate_matrix.1} parent=0 // pred_fallthru
    _
  // Predicated region
  $region10: #{scale_rotate_matrix.1} parent=0 // pred_check
    _
  $region11: #{scale_rotate_matrix.1} parent=0 // pred_check_branch
    %235 = sbr.rel (0) target = $region13
  $region12: #{scale_rotate_matrix.1} parent=0 // pred_region
    _
  $region13: #{scale_rotate_matrix.1} parent=0 // pred_fallthru
    _

</llo_original>
